<compile_context>
chip_gen: v6e
topology: v6e:2x2x1
jax: 0.10.0
libtpu: 0.0.40
codegen_flags: <defaults>
</compile_context>

<pallas_src>
import math
from functools import partial

import jax
import jax.numpy as jnp
from jax.experimental import pallas as pl
from jax.experimental.pallas import tpu as pltpu

F32 = jnp.float32
BF16 = jnp.bfloat16

_ROW_TILE_CAP = 512
_ROW_ALIGN = 16                         # bf16 packs 2 rows / sublane -> 16-row alignment
_ATT_ROW_BUDGET = 6 * 1024 * 1024       # per-buffer VMEM budget for att_score x2/k tiles
_GRID1_PARAMS = pltpu.CompilerParams(
    dimension_semantics=("parallel",),  # shard row tiles across TensorCores (v7x)
    vmem_limit_bytes=32 * 1024 * 1024)  # safe on v5e/v6e/v7x


# ----------------------------- tiling helpers ------------------------------

def _row_tiles(m, cap=_ROW_TILE_CAP):
    """Pick a row-tile size: 16-row aligned, >= 2 grid steps whenever m > 32 so a
    'parallel' 1-D grid can shard across v7x's two TensorCores.  Returns
    (padded_row_count, tile_rows, grid)."""
    al = _ROW_ALIGN
    m_al = max(al, ((m + al - 1) // al) * al)
    if m_al <= 2 * al:
        tm = m_al
    else:
        half = ((pl.cdiv(m_al, 2) + al - 1) // al) * al
        tm = max(al, min(cap, half))
    return m_al, tm, (pl.cdiv(m_al, tm),)


def _pad_rows(x, mp):
    """Pad rows only when needed (common case: no HBM copy at all)."""
    if x.shape[0] == mp:
        return x
    pad = [(0, mp - x.shape[0])] + [(0, 0)] * (x.ndim - 1)
    return jnp.pad(x, pad)


def _full_spec(shape):
    nd = len(shape)
    return pl.BlockSpec(shape, lambda *_, _nd=nd: (0,) * _nd)


# ----------------------------- Pallas kernels ------------------------------

def _dense_kernel(*refs, act, has_bias):
    if has_bias:
        x_ref, w_ref, b_ref, o_ref = refs
    else:
        x_ref, w_ref, o_ref = refs
        b_ref = None
    y = jnp.dot(x_ref[...].astype(BF16), w_ref[...], preferred_element_type=F32)
    if b_ref is not None:
        y = y + b_ref[...]
    if act == "tanh":
        y = jnp.tanh(y)
    elif act == "relu":
        y = jnp.maximum(y, 0.0)
    o_ref[...] = y.astype(o_ref.dtype)


def dense(x, w, b=None, act="none", out_dtype=F32):
    """(M, K) @ (K, N) [+ b], bf16 MXU inputs / f32 accumulation, row-tiled grid."""
    M, K = x.shape
    N = w.shape[1]
    mp, tm, grid = _row_tiles(M)
    xp = _pad_rows(x, mp)
    in_specs = [pl.BlockSpec((tm, K), lambda i: (i, 0)), _full_spec(w.shape)]
    args = [xp, w]
    if b is not None:
        in_specs.append(_full_spec(b.shape))
        args.append(b)
    out = pl.pallas_call(
        partial(_dense_kernel, act=act, has_bias=b is not None),
        grid=grid,
        in_specs=in_specs,
        out_specs=pl.BlockSpec((tm, N), lambda i: (i, 0)),
        out_shape=jax.ShapeDtypeStruct((mp, N), out_dtype),
        compiler_params=_GRID1_PARAMS,
    )(*args)
    return out[:M] if mp != M else out


def _blk_trans_kernel(x_ref, w1_ref, b1_ref, w2_ref, b2_ref, g_ref, beta_ref, o_ref):
    # Linear(768 -> 2d) + ReLU + (Dropout=identity) + Linear(2d -> d) + LayerNorm(d)
    h = jnp.dot(x_ref[...].astype(BF16), w1_ref[...], preferred_element_type=F32) + b1_ref[...]
    h = jnp.maximum(h, 0.0)
    y = jnp.dot(h.astype(BF16), w2_ref[...], preferred_element_type=F32) + b2_ref[...]
    mu = jnp.mean(y, axis=-1, keepdims=True)                 # LayerNorm in f32
    var = jnp.mean(jnp.square(y - mu), axis=-1, keepdims=True)
    o_ref[...] = ((y - mu) * jax.lax.rsqrt(var + 1e-5) * g_ref[...]
                  + beta_ref[...]).astype(o_ref.dtype)


def blk_trans(p, x, out_dtype=BF16):
    """Fused blk_trans on any array with trailing dim 768; bf16 output (all
    consumers feed it to bf16 MXU inputs) halves the HBM traffic."""
    shp = x.shape
    x2d = x.reshape(-1, shp[-1])
    M = x2d.shape[0]
    d = p["w2"].shape[1]
    mp, tm, grid = _row_tiles(M)
    xp = _pad_rows(x2d, mp)
    ws = [p["w1"], p["b1"], p["w2"], p["b2"], p["gamma"], p["beta"]]
    out = pl.pallas_call(
        _blk_trans_kernel,
        grid=grid,
        in_specs=[pl.BlockSpec((tm, shp[-1]), lambda i: (i, 0))]
                 + [_full_spec(w.shape) for w in ws],
        out_specs=pl.BlockSpec((tm, d), lambda i: (i, 0)),
        out_shape=jax.ShapeDtypeStruct((mp, d), out_dtype),
        compiler_params=_GRID1_PARAMS,
    )(xp, *ws)
    out = out[:M] if mp != M else out
    return out.reshape(shp[:-1] + (d,))


def _mha_kernel(q_ref, v_ref, kv_ref, wq_ref, bq_ref, wo_ref, bo_ref, wqm_ref,
                o_ref, qm_ref, head_buf, *, heads, dh, inv_scale):
    # Fused cross attention: Q proj, per-head softmax against precomputed K/V,
    # output proj, plus the memory-query projection linear_q(attn_out + v_all).
    d = heads * dh
    qp = jnp.dot(q_ref[...].astype(BF16), wq_ref[...], preferred_element_type=F32) + bq_ref[...]
    kv = kv_ref[...]                                         # (n_kv, 2d) f32, computed once
    for h in range(heads):                                   # static, small head count
        qh = qp[:, h * dh:(h + 1) * dh]
        kh = kv[:, h * dh:(h + 1) * dh]
        vh = kv[:, d + h * dh:d + (h + 1) * dh]
        s = jnp.einsum("md,nd->mn", qh, kh, preferred_element_type=F32) * inv_scale
        s = s - jnp.max(s, axis=-1, keepdims=True)
        e = jnp.exp(s)
        a = e / jnp.sum(e, axis=-1, keepdims=True)           # exact softmax (values feed output)
        # slice-write into VMEM scratch instead of a lane concatenate
        head_buf[:, h * dh:(h + 1) * dh] = jnp.dot(a, vh, preferred_element_type=F32)
    o = jnp.dot(head_buf[...].astype(BF16), wo_ref[...], preferred_element_type=F32) + bo_ref[...]
    o_ref[...] = o.astype(o_ref.dtype)
    # fused MemoryUpdate.linear_q(transformed_v + v_all)  (bias-free in reference)
    qm_ref[...] = jnp.dot((o + v_ref[...]).astype(BF16), wqm_ref[...],
                          preferred_element_type=F32).astype(qm_ref.dtype)


def mha_attention(p, q_in, v_in, kv, wq_mem, heads):
    """Fused multi-head cross attention over precomputed K/V (the reference merely
    .repeat()s the target vectors, so K/V are identical per batch element)."""
    bs, Lq, d = q_in.shape
    dh = d // heads
    M = bs * Lq
    mp, tm, grid = _row_tiles(M)
    qp = _pad_rows(q_in.reshape(M, d), mp)
    vp = _pad_rows(v_in.reshape(M, d), mp)
    shared = [kv, p["wq"], p["bq"], p["wo"], p["bo"], wq_mem]
    out, q_mem = pl.pallas_call(
        partial(_mha_kernel, heads=heads, dh=dh, inv_scale=1.0 / math.sqrt(dh)),
        grid=grid,
        in_specs=[pl.BlockSpec((tm, d), lambda i: (i, 0)),
                  pl.BlockSpec((tm, d), lambda i: (i, 0))]
                 + [_full_spec(a.shape) for a in shared],
        out_specs=(pl.BlockSpec((tm, d), lambda i: (i, 0)),
                   pl.BlockSpec((tm, d), lambda i: (i, 0))),
        out_shape=(jax.ShapeDtypeStruct((mp, d), BF16),
                   jax.ShapeDtypeStruct((mp, d), F32)),
        scratch_shapes=[pltpu.VMEM((tm, d), F32)],
        compiler_params=_GRID1_PARAMS,
    )(qp, vp, *shared)
    if mp != M:
        out, q_mem = out[:M], q_mem[:M]
    return out.reshape(bs, Lq, d), q_mem.reshape(bs, Lq, d)


def _att_score_kernel(x1_ref, x2_ref, m_ref, w1a_ref, w1b_ref, b1_ref, w2_ref, wk_ref,
                      s_ref, k_ref):
    # score[r, b] = tanh(x1[r] @ w1a + x2[r, b] @ w1b + b1) . w2 ; softmax over b;
    # then the post-softmax mask (reference order).  The (.., 2d) concat of the
    # reference is never materialized: w1 is pre-split into w1a / w1b, and the
    # per-block work is a single flattened (tm*blk, d) MXU contraction.
    tm, blk, d = x2_ref.shape
    x2f = x2_ref[...].reshape(tm * blk, d).astype(BF16)
    t1 = jnp.dot(x1_ref[...].astype(BF16), w1a_ref[...], preferred_element_type=F32) + b1_ref[...]
    t2 = jnp.dot(x2f, w1b_ref[...], preferred_element_type=F32)
    h = jnp.tanh(t1[:, None, :] + t2.reshape(tm, blk, d))
    s = jnp.sum(h * w2_ref[...], axis=-1)                    # (tm, blk), one XLU reduce
    s = s - jnp.max(s, axis=-1, keepdims=True)
    e = jnp.exp(s)
    a = e * pl.reciprocal(jnp.sum(e, axis=-1, keepdims=True), approx=True)  # only top_k ordering used
    s_ref[...] = jnp.where(m_ref[...] == 0, 0.0, a)
    # fused MemoryUpdate.linear_k of every candidate text block (x2 already in VMEM)
    k = jnp.dot(x2f, wk_ref[...], preferred_element_type=F32)
    k_ref[...] = k.reshape(tm, blk, d).astype(k_ref.dtype)


def att_score_and_k(p, wk, tva, vtext, masks_txt):
    """Fused att_mlp + softmax + mask, plus the memory-key projection of every block."""
    bs, seq, d = tva.shape
    blk = vtext.shape[2]
    M = bs * seq
    # Footprint-aware row cap: the (tm, blk, d) x2 / k tiles dominate VMEM use
    # (keeps well under the 32 MiB scoped limit and v7x's 64 MiB physical VMEM).
    per_row = blk * d * (vtext.dtype.itemsize + 2) + d * 4 + blk * 8 + 64
    cap = max(_ROW_ALIGN, (int(_ATT_ROW_BUDGET // per_row) // _ROW_ALIGN) * _ROW_ALIGN)
    mp, tm, grid = _row_tiles(M, cap=min(_ROW_TILE_CAP, cap))
    x1 = _pad_rows(tva.reshape(M, d), mp)
    x2 = _pad_rows(vtext.reshape(M, blk, d), mp)
    m = _pad_rows(masks_txt.reshape(M, blk).astype(jnp.int32), mp)
    shared = [p["w1a"], p["w1b"], p["b1"], p["w2"], wk]
    score, k_all = pl.pallas_call(
        _att_score_kernel,
        grid=grid,
        in_specs=[pl.BlockSpec((tm, d), lambda i: (i, 0)),
                  pl.BlockSpec((tm, blk, d), lambda i: (i, 0, 0)),
                  pl.BlockSpec((tm, blk), lambda i: (i, 0))]
                 + [_full_spec(a.shape) for a in shared],
        out_specs=(pl.BlockSpec((tm, blk), lambda i: (i, 0)),
                   pl.BlockSpec((tm, blk, d), lambda i: (i, 0, 0))),
        out_shape=(jax.ShapeDtypeStruct((mp, blk), F32),
                   jax.ShapeDtypeStruct((mp, blk, d), BF16)),
        compiler_params=_GRID1_PARAMS,
    )(x1, x2, m, *shared)
    if mp != M:
        score, k_all = score[:M], k_all[:M]
    return score.reshape(bs, seq, blk), k_all.reshape(bs, seq, blk, d)


def _final_head_kernel(tva_ref, len_ref, memv_ref, w_ref, b_ref, o_ref):
    # Fused: length-masked max-pool over v, max-pool over memory vectors, Linear.
    tva = tva_ref[...].astype(F32)                            # (bs, L, d)
    bs, L, d = tva.shape
    pos = jax.lax.broadcasted_iota(jnp.int32, (bs, L), 1)
    neg = jnp.where(pos < len_ref[...], 0.0, -1e30).astype(F32)   # len_ref: (bs, 1)
    v_final = jnp.max(tva + neg[:, :, None], axis=1)          # (bs, d)
    # TODO(synk): reference MaxPoolLayer pools the memory vectors without a mask; matched here.
    m_final = jnp.max(memv_ref[...].astype(F32), axis=1)      # (bs, d)
    w = w_ref[...]                                            # (2d, 2) bf16; split -> no lane concat
    o_ref[...] = (jnp.dot(v_final.astype(BF16), w[:d], preferred_element_type=F32)
                  + jnp.dot(m_final.astype(BF16), w[d:], preferred_element_type=F32)
                  + b_ref[...])


def final_head(p, tva, lengths, mem_vec):
    bs = tva.shape[0]
    return pl.pallas_call(
        _final_head_kernel,
        out_shape=jax.ShapeDtypeStruct((bs, p["w"].shape[1]), F32),
    )(tva, lengths.reshape(bs, 1).astype(jnp.int32), mem_vec, p["w"], p["b"])


# ------------------------------ model pieces -------------------------------

def gram_encode(params, input_seqs):
    # TODO(synk): Gram's graph attention over the ontology tree is not in the reference
    # source; approximated by per-visit code-embedding sum followed by tanh(Linear).
    emb = jnp.take(params["gram_emb"], input_seqs, axis=0)    # (bs, seq, codes, d)
    visit = jnp.sum(emb, axis=2)                              # (bs, seq, d)
    bs, L, d = visit.shape
    v = dense(visit.reshape(bs * L, d), params["gram_w"], params["gram_b"], act="tanh")
    return v.reshape(bs, L, d)


def text_decoder_gram_forward(params, input_seqs, masks_ehr, input_txt, masks_txt,
                              lengths, time_step, code_mask, *, mem_size,
                              mem_update_size, target_att_heads):
    del masks_ehr, time_step, code_mask            # unused by the reference forward
    d_model = params["d_model"]

    # --- EHR / Gram encoder ---------------------------------------------------
    v_all = gram_encode(params, input_seqs)                          # (bs, seq, d) f32
    bs, seq_length, _ = v_all.shape

    # --- target-disease cross attention ---------------------------------------
    # K/V are computed ONCE from the shared (un-repeated) target vectors; the
    # memory-query projection q_all = linear_q(attn_out + v_all) is fused in.
    tdv = blk_trans(params["blk_trans"], params["target_disease_vectors"])     # (n_t, d)
    kv = dense(tdv, params["att"]["wkv"], params["att"]["bkv"])                # (n_t, 2d)
    transformed_v_all, q_all = mha_attention(
        params["att"], v_all, v_all, kv, params["mem"]["wq"], target_att_heads)

    # --- text block transform + fused attention scores / memory keys ----------
    txt_emb = jnp.take(params["blk_emb"], input_txt, axis=0)        # (bs, seq, blk, 768)
    v_text_all = blk_trans(params["blk_trans"], txt_emb)            # (bs, seq, blk, d) bf16

    score, k_all = att_score_and_k(params["att_mlp"], params["mem"]["wk"],
                                   transformed_v_all, v_text_all, masks_txt)
    _, indices = jax.lax.top_k(score, mem_update_size)              # (bs, seq, mus)
    selected_txt_ids = jnp.take_along_axis(input_txt, indices, axis=2)
    selected_masks = jnp.take_along_axis(masks_txt, indices, axis=2)
    sel_k = jnp.take_along_axis(k_all, indices[..., None], axis=2)  # (bs, seq, mus, d) bf16

    # --- memory loop (zero Pallas launches; peeled prefix + lax.scan steady state)
    # (linear_v of the reference MemoryUpdate is dead code and is omitted.)
    inv_scale = 1.0 / math.sqrt(d_model)

    def mem_update(ids, msk, k, q):
        energy = jnp.einsum("bd,bld->bl", q, k.astype(F32)) * inv_scale
        attn = jax.nn.softmax(energy, axis=-1)
        attn = jnp.where(msk == 0, 0.0, attn)                       # post-softmax mask (reference order)
        _, idx = jax.lax.top_k(attn, mem_size)
        return (jnp.take_along_axis(ids, idx, axis=1),
                jnp.take_along_axis(msk, idx, axis=1),
                jnp.take_along_axis(k, idx[..., None], axis=1))

    def maybe_update(ids, msk, k, q):
        if ids.shape[1] > mem_size:                                 # static condition, as in reference
            return mem_update(ids, msk, k, q)
        return ids, msk, k

    def append(state, i):
        ids, msk, k = state
        return (jnp.concatenate([ids, selected_txt_ids[:, i]], axis=1),
                jnp.concatenate([msk, selected_masks[:, i]], axis=1),
                jnp.concatenate([k, sel_k[:, i]], axis=1))

    state = maybe_update(selected_txt_ids[:, 0], selected_masks[:, 0], sel_k[:, 0],
                         q_all[:, 0])
    mem_rows = []                                                   # memory[1:]
    i = 1
    # Peel steps until the carry reaches its steady mem_size width (normally one step).
    while i < seq_length and (i == 1 or state[0].shape[1] != mem_size):
        state = maybe_update(*append(state, i), q_all[:, i])
        mem_rows.append(state[0])
        i += 1
    mem_stack = jnp.stack(mem_rows, axis=1) if mem_rows else None
    if i < seq_length:                 # steady state: fixed (mem_size + mem_update_size) buffers
        def scan_step(carry, xs):
            q_i, ids_i, msk_i, k_i = xs
            out = mem_update(jnp.concatenate([carry[0], ids_i], axis=1),
                             jnp.concatenate([carry[1], msk_i], axis=1),
                             jnp.concatenate([carry[2], k_i], axis=1), q_i)
            return out, out[0]
        xs = (jnp.swapaxes(q_all[:, i:], 0, 1),
              jnp.swapaxes(selected_txt_ids[:, i:], 0, 1),
              jnp.swapaxes(selected_masks[:, i:], 0, 1),
              jnp.swapaxes(sel_k[:, i:], 0, 1))
        _, ys = jax.lax.scan(scan_step, state, xs)
        mem_stack = jnp.concatenate([mem_stack, jnp.swapaxes(ys, 0, 1)], axis=1)

    # NOTE: as in the reference, lengths >= 2 is assumed for the (lengths - 2) gather.
    gather_idx = jnp.broadcast_to((lengths - 2)[:, None, None], (bs, 1, mem_size))
    memory_final = jnp.take_along_axis(mem_stack, gather_idx, axis=1).reshape(bs, mem_size)

    # --- pooling + output head -------------------------------------------------
    mem_emb = jnp.take(params["blk_emb"], memory_final, axis=0)     # (bs, mem_size, 768)
    mem_vec = blk_trans(params["blk_trans"], mem_emb)               # (bs, mem_size, d) bf16
    output = final_head(params["output_mlp"], transformed_v_all, lengths, mem_vec)
    return output, memory_final


# -------------------------- deterministic params ---------------------------

def init_params(key, cfg):
    d = cfg["d_model"]
    ks = jax.random.split(key, 32)

    def nrm(k, shape, dtype=F32, scale=0.05):
        return (scale * jax.random.normal(k, shape)).astype(dtype)

    p = {"d_model": d}
    p["blk_emb"] = nrm(ks[0], (cfg["n_blk_vocab"], 768), BF16)      # frozen block embedding
    p["blk_trans"] = dict(
        w1=nrm(ks[1], (768, 2 * d), BF16), b1=nrm(ks[2], (1, 2 * d)),
        w2=nrm(ks[3], (2 * d, d), BF16),   b2=nrm(ks[4], (1, d)),
        gamma=jnp.ones((1, d), F32), beta=jnp.zeros((1, d), F32),
    )
    p["target_disease_vectors"] = nrm(ks[5], (cfg["n_targets"], 768), BF16)
    # target-disease cross attention: K/V projections fused into one (d, 2d) weight
    p["att"] = dict(
        wq=nrm(ks[6], (d, d), BF16),      bq=nrm(ks[7], (1, d)),
        wkv=nrm(ks[8], (d, 2 * d), BF16), bkv=nrm(ks[9], (1, 2 * d)),
        wo=nrm(ks[10], (d, d), BF16),     bo=nrm(ks[11], (1, d)),
    )
    # att_mlp: Linear(2d->d) stored as the two d x d halves (applied to each concat operand)
    p["att_mlp"] = dict(w1a=nrm(ks[12], (d, d), BF16), w1b=nrm(ks[13], (d, d), BF16),
                        b1=nrm(ks[14], (1, d)), w2=nrm(ks[15], (1, d)))
    # MemoryUpdate projections (bias-free); linear_v is unused in the reference forward.
    p["mem"] = dict(wq=nrm(ks[16], (d, d), BF16), wk=nrm(ks[17], (d, d), BF16))
    p["output_mlp"] = dict(w=nrm(ks[18], (2 * d, 2), BF16), b=nrm(ks[19], (1, 2)))
    p["gram_emb"] = nrm(ks[20], (cfg["vocab_size"] + cfg["num_ancestors"], d))
    p["gram_w"] = nrm(ks[21], (d, d), BF16)
    p["gram_b"] = nrm(ks[22], (1, d))
    return p


if __name__ == "__main__":
    cfg = dict(vocab_size=40, num_ancestors=10, d_model=32, n_blk_vocab=50,
               n_targets=5, target_att_heads=2, mem_size=4, mem_update_size=3)
    bs, seq_len, codes_per_visit, blk_per_visit = 2, 4, 5, 6

    key = jax.random.PRNGKey(0)
    k_in, k_par = jax.random.split(key)
    params = init_params(k_par, cfg)

    k1, k2, k3 = jax.random.split(k_in, 3)
    input_seqs = jax.random.randint(k1, (bs, seq_len, codes_per_visit), 0,
                                    cfg["vocab_size"], dtype=jnp.int32)
    masks_ehr = jnp.ones((bs, seq_len, codes_per_visit), jnp.int32)
    input_txt = jax.random.randint(k2, (bs, seq_len, blk_per_visit), 0,
                                   cfg["n_blk_vocab"], dtype=jnp.int32)
    masks_txt = (jax.random.uniform(k3, (bs, seq_len, blk_per_visit)) > 0.2).astype(jnp.int32)
    lengths = jnp.array([4, 3], jnp.int32)
    time_step = jnp.zeros((bs, seq_len), jnp.int32)
    code_mask = jnp.ones((bs, seq_len, codes_per_visit), jnp.int32)

    out, mem_final = text_decoder_gram_forward(
        params, input_seqs, masks_ehr, input_txt, masks_txt, lengths, time_step, code_mask,
        mem_size=cfg["mem_size"], mem_update_size=cfg["mem_update_size"],
        target_att_heads=cfg["target_att_heads"])
    jax.block_until_ready((out, mem_final))

    assert out.shape == (bs, 2)
    assert mem_final.shape == (bs, cfg["mem_size"])
    print("KERNEL_OK")
</pallas_src>

<mosaic_0001>
module attributes {stable_mosaic.version = 11 : i64} {
  func.func @_dense_kernel(%arg0: i32, %arg1: memref<16x32xf32, #tpu.memory_space<vmem>>, %arg2: memref<32x32xbf16, #tpu.memory_space<vmem>>, %arg3: memref<1x32xf32, #tpu.memory_space<vmem>>, %arg4: memref<16x32xf32, #tpu.memory_space<vmem>>) attributes {dimension_semantics = [#tpu.dimension_semantics<parallel>], iteration_bounds = array<i64: 1>, scalar_prefetch = 0 : i64, scratch_operands = 0 : i64, tpu.core_type = #tpu.core_type<tc>, window_params = [{transform_indices = @transform_0, window_bounds = array<i64: 16, 32>}, {pipeline_mode = #tpu.pipeline_mode<synchronous>, transform_indices = @transform_1, window_bounds = array<i64: 32, 32>}, {pipeline_mode = #tpu.pipeline_mode<synchronous>, transform_indices = @transform_2, window_bounds = array<i64: 1, 32>}, {transform_indices = @transform_3, window_bounds = array<i64: 16, 32>}]} {
    %c0 = arith.constant 0 : index
    %c0_0 = arith.constant 0 : index
    %0 = vector.load %arg1[%c0, %c0_0] : memref<16x32xf32, #tpu.memory_space<vmem>>, vector<16x32xf32>
    %1 = arith.truncf %0 : vector<16x32xf32> to vector<16x32xbf16>
    %c0_1 = arith.constant 0 : index
    %c0_2 = arith.constant 0 : index
    %2 = vector.load %arg2[%c0_1, %c0_2] : memref<32x32xbf16, #tpu.memory_space<vmem>>, vector<32x32xbf16>
    %cst = arith.constant dense<0.000000e+00> : vector<16x32xf32>
    %3 = tpu.matmul %1, %2, %cst {dimension_numbers = #tpu.dot_dimension_numbers<[1], [0], [0], [1], [0, 0, 1, 1], [], []>} : vector<16x32xbf16>, vector<32x32xbf16>, vector<16x32xf32> -> vector<16x32xf32>
    %c0_3 = arith.constant 0 : index
    %c0_4 = arith.constant 0 : index
    %4 = vector.load %arg3[%c0_3, %c0_4] : memref<1x32xf32, #tpu.memory_space<vmem>>, vector<1x32xf32>
    %5 = vector.broadcast %4 : vector<1x32xf32> to vector<16x32xf32>
    %6 = arith.addf %3, %5 : vector<16x32xf32>
    %7 = math.tanh %6 : vector<16x32xf32>
    %c0_5 = arith.constant 0 : index
    %c0_6 = arith.constant 0 : index
    %8 = vector.load %arg4[%c0_5, %c0_6] : memref<16x32xf32, #tpu.memory_space<vmem>>, vector<16x32xf32>
    tpu.vector_store %arg4[%c0_5, %c0_6], %7 {strides = array<i32>} : memref<16x32xf32, #tpu.memory_space<vmem>>, vector<16x32xf32>,
    return
  }
  func.func @transform_0(%arg0: i32) -> (i32, i32) {
    %c0_i32 = arith.constant 0 : i32
    %c0_i32_0 = arith.constant 0 : i32
    return %arg0, %c0_i32 : i32, i32
  }
  func.func @transform_1(%arg0: i32) -> (i32, i32) {
    %c0_i32 = arith.constant 0 : i32
    %c0_i32_0 = arith.constant 0 : i32
    %c0_i32_1 = arith.constant 0 : i32
    return %c0_i32, %c0_i32_0 : i32, i32
  }
  func.func @transform_2(%arg0: i32) -> (i32, i32) {
    %c0_i32 = arith.constant 0 : i32
    %c0_i32_0 = arith.constant 0 : i32
    %c0_i32_1 = arith.constant 0 : i32
    return %c0_i32, %c0_i32_0 : i32, i32
  }
  func.func @transform_3(%arg0: i32) -> (i32, i32) {
    %c0_i32 = arith.constant 0 : i32
    %c0_i32_0 = arith.constant 0 : i32
    return %arg0, %c0_i32 : i32, i32
  }
}

</mosaic_0001>

<llo_original>
// kernel: tpu_custom_call.1
$region0: #{tpu_custom_call.1}
  #allocation0 [shape = 'u32[]', space=smem, size = 0x4, offset = 0x4, fixed_abs, tag = 'smem constant byte address 0x4 - core index']
  #allocation1 [shape = 'u32[144,128]{1,0:T(1,128)}', space=vmem, size = 0x12000, scoped, tag = 'internal scratch']
  %s0 = inlined_call_operand.hbm [shape: f32[16,32], index: 0, kind: input, shape index: {}]
  %s1 = inlined_call_operand.hbm [shape: bf16[32,32], index: 1, kind: input, shape index: {}]
  %s2 = inlined_call_operand.vmem [shape: f32[1,32], index: 2, kind: input, shape index: {}]
  %s3 = inlined_call_operand.hbm [shape: f32[16,32], index: 3, kind: output, shape index: {}]
  %s4 = sld [smem:[#allocation0]]
  $region30: #{tpu_custom_call.1} parent=0
    _
  %s6 = ssub.s32 1, %s4
  %s7 = scalar_select 0, %s6, %s4
  $region1: #{tpu_custom_call.1} parent=0
    #allocation2 [shape = 'u8[8192]{0}', space=vmem, size = 0x2000, scoped, tag = 'input window, operand 0, single buffered']
    #allocation3 [shape = 's32[1]{0}', space=sflag, size = 0x4, scoped, tag = 'scoped memory for tpu_custom_call.1']
    #allocation4 [shape = 's32[1]{0}', space=sflag, size = 0x4, scoped, tag = 'scoped memory for tpu_custom_call.1']
    #allocation5 [shape = 'u8[8192]{0}', space=vmem, size = 0x2000, scoped, tag = 'input window, operand 1, single buffered']
    #allocation6 [shape = 's32[1]{0}', space=sflag, size = 0x4, scoped, tag = 'scoped memory for tpu_custom_call.1']
    #allocation7 [shape = 'u8[8192]{0}', space=vmem, size = 0x2000, scoped, tag = 'output window, operand 0, single buffered']
    %8 = vsyncpa [#allocation3], 0
    %9 = vsyncpa [#allocation6], 0
    %10 = vsyncpa [#allocation4], 0
    // Predicated region
    $region2: #{tpu_custom_call.1} parent=1 // pred_check
      _
    $region3: #{tpu_custom_call.1} parent=1 // pred_check_branch
      %12 = sbr.rel (0) target = $region5
    $region4: #{tpu_custom_call.1} parent=1 // pred_region
      %s14 = ssub.s32 256, 256
      %15 = vsyncadd [#allocation3], %s14
      %s16 = sshll.u32 [#allocation2], 4
      %s17 = int_to_ptr.vmem [resolvable:$true] %s16
      %22 = dma.hbm_to_vmem [thread:$0]  %s0, 256, %s17, [#allocation3], 128, 128, 8
    $region5: #{tpu_custom_call.1} parent=1 // pred_fallthru
      _
    // Predicated region
    $region6: #{tpu_custom_call.1} parent=1 // pred_check
      _
    $region7: #{tpu_custom_call.1} parent=1 // pred_check_branch
      %24 = sbr.rel (0) target = $region9
    $region8: #{tpu_custom_call.1} parent=1 // pred_region
      %s26 = ssub.s32 256, 256
      %27 = vsyncadd [#allocation6], %s26
      %s28 = sshll.u32 [#allocation5], 4
      %s29 = int_to_ptr.vmem [resolvable:$true] %s28
      %34 = dma.hbm_to_vmem [thread:$0]  %s1, 256, %s29, [#allocation6], 64, 64, 4
    $region9: #{tpu_custom_call.1} parent=1 // pred_fallthru
      _
    // Predicated region
    $region10: #{tpu_custom_call.1} parent=1 // pred_check
      _
    $region11: #{tpu_custom_call.1} parent=1 // pred_check_branch
      %36 = sbr.rel (0) target = $region13
    $region12: #{tpu_custom_call.1} parent=1 // pred_region
      _
    $region13: #{tpu_custom_call.1} parent=1 // pred_fallthru
      _
    // Predicated region
    $region14: #{tpu_custom_call.1} parent=1 // pred_check
      _
    $region15: #{tpu_custom_call.1} parent=1 // pred_check_branch
      %38 = sbr.rel (0) target = $region17
    $region16: #{tpu_custom_call.1} parent=1 // pred_region
      %39 = dma.done [#allocation3], 256
    $region17: #{tpu_custom_call.1} parent=1 // pred_fallthru
      _
    // Predicated region
    $region18: #{tpu_custom_call.1} parent=1 // pred_check
      _
    $region19: #{tpu_custom_call.1} parent=1 // pred_check_branch
      %41 = sbr.rel (0) target = $region21
    $region20: #{tpu_custom_call.1} parent=1 // pred_region
      %42 = dma.done [#allocation6], 256
    $region21: #{tpu_custom_call.1} parent=1 // pred_fallthru
      _
    %v44 = vld [vmem:[#allocation2] sm:$0xff]
    %v45 = vld [vmem:[#allocation2 + $0x8] sm:$0xff]
    %v46 = vpack.c.bf16 %v45, %v44
    %v47 = vld [vmem:[#allocation5] sm:$0xf]
    %v48 = vld [vmem:[#allocation5 + $0x4] sm:$0xf]
    %v49 = vld [vmem:[#allocation5 + $0x8] sm:$0xf]
    %v50 = vld [vmem:[#allocation5 + $0xc] sm:$0xf]
    %v51 = vld [vmem:[%s2] sm:$0x1]
    %v53 = vlaneseq
    %v54 = vshrl.u32 %v53, 7
    %v55 = vsub.s32 0, %v54
    %v56 = vrot.slane %v51, %v55
    %v62 = vunpack.c.l.b16 %v47
    %v63 = vunpack.c.l.b16 %v48
    %v64 = vunpack.c.l.b16 %v49
    %v65 = vunpack.c.l.b16 %v50
    %v66 = vpack.c.b16 %v63, %v62
    %v67 = vpack.c.b16 %v65, %v64
    %vm70 = vcmask 261120
    %v72 = vsel %vm70, %v46, 0
    %74 = vmatprep.subr.bf16.mxu0 0
    %75 = vmatpush1.bf16.msra.mxu0 0
    %76 = vmatprep.subr.bf16.mxu0 0
    %77 = vmatpush1.bf16.msra.mxu0 0
    %78 = vmatprep.subr.bf16.mxu0 0
    %79 = vmatpush1.bf16.msra.mxu0 0
    %80 = vmatprep.subr.bf16.mxu0 0
    %81 = vmatpush1.bf16.msra.mxu0 0
    %82 = vmatprep.subr.bf16.mxu0 0
    %83 = vmatpush1.bf16.msra.mxu0 0
    %84 = vmatprep.subr.bf16.mxu0 0
    %85 = vmatpush1.bf16.msra.mxu0 0
    %86 = vmatprep.subr.bf16.mxu0 0
    %87 = vmatpush1.bf16.msra.mxu0 %v67
    %88 = vmatprep.subr.bf16.mxu0 0
    %89 = vmatpush1.bf16.msra.mxu0 %v66
    %90 = vmatprep.subr.bf16.mxu0 0
    %91 = vmatpush2.bf16.msra.mxu0 0
    %92 = vmatprep.subr.bf16.mxu0 0
    %93 = vmatpush2.bf16.msra.mxu0 0
    %94 = vmatprep.subr.bf16.mxu0 0
    %95 = vmatpush2.bf16.msra.mxu0 0
    %96 = vmatprep.subr.bf16.mxu0 0
    %97 = vmatpush2.bf16.msra.mxu0 0
    %98 = vmatprep.subr.bf16.mxu0 0
    %99 = vmatpush2.bf16.msra.mxu0 0
    %100 = vmatprep.subr.bf16.mxu0 0
    %101 = vmatpush2.bf16.msra.mxu0 0
    %102 = vmatprep.subr.bf16.mxu0 0
    %103 = vmatpush2.bf16.msra.mxu0 0
    %104 = vmatprep.subr.bf16.mxu0 0
    %105 = vmatpush2.bf16.msra.mxu0 0
    %106 = vmatprep.mubr.bf16.mxu0 0
    %107 = vmatmul.mubr.bf16.gmra.mxu0 %v72
    %v108 = vpop.f32.mrf.mxu0
    %v109 = vadd.f32 %v56, %v108
    %v110 = vpop.f32.mrf.mxu0
    %v111 = vpop.f32.mrf.mxu0
    %v112 = vadd.f32 %v56, %v111
    %v113 = vpop.f32.mrf.mxu0
    %114 = vdwg.mxu0
    %v115 = vtanh.pop %v109
    %v116 = vtanh.pop %v112
    %117 = vst.msk [vmem:[#allocation7] sm:$0xff] %vm70, %v115
    %118 = vst.msk [vmem:[#allocation7 + $0x8] sm:$0xff] %vm70, %v116
    // Predicated region
    $region22: #{tpu_custom_call.1} parent=1 // pred_check
      _
    $region23: #{tpu_custom_call.1} parent=1 // pred_check_branch
      %120 = sbr.rel (0) target = $region25
    $region24: #{tpu_custom_call.1} parent=1 // pred_region
      %s122 = ssub.s32 256, 256
      %123 = vsyncadd [#allocation4], %s122
      %s124 = sshll.u32 [#allocation7], 4
      %s125 = int_to_ptr.vmem [resolvable:$true] %s124
      %130 = dma.vmem_to_hbm [thread:$0]  %s125, 256, %s3, [#allocation4], 128, 128, 8
    $region25: #{tpu_custom_call.1} parent=1 // pred_fallthru
      _
    // Predicated region
    $region26: #{tpu_custom_call.1} parent=1 // pred_check
      _
    $region27: #{tpu_custom_call.1} parent=1 // pred_check_branch
      %132 = sbr.rel (0) target = $region29
    $region28: #{tpu_custom_call.1} parent=1 // pred_region
      %133 = dma.done [#allocation4], 256
    $region29: #{tpu_custom_call.1} parent=1 // pred_fallthru
      _
    %134 = vsyncpa [#allocation3], 1
    %135 = vsyncpa [#allocation6], 1
    %136 = vsyncpa [#allocation4], 1

</llo_original>
